<compile_context>
chip_gen: v7x
topology: tpu7x:2x2x1
jax: 0.10.0
libtpu: 0.0.40
codegen_flags: <defaults>
</compile_context>

<pallas_src>
import jax
import jax.numpy as jnp
from jax.experimental import pallas as pl
from jax.experimental.pallas import tpu as pltpu

# Physical constants from the PyTorch module.
UAV_M = 300.0
G = 9.81
M_mom, N_mom, L_bar = 1.0, 1.0, 1.0
I_x, I_y, I_z, I_xz = 1.0, 1.0, 1.0, 0.0

# Precomputed inverse constants (divide -> multiply).
INV_UAV_M = 1.0 / UAV_M
DENOM = I_z * I_x - I_xz ** 2
INV_DENOM = 1.0 / DENOM
INV_I_Y = 1.0 / I_y

NUM_FEATURES = 15
LANES = 128
DEFAULT_BLOCK_ROWS = 256  # 256 * 128 = 32768 batch elements per grid step


def uav_dynamics_kernel(x_ref, o_ref):
    # x_ref, o_ref: (15, block_rows, 128) float32 in VMEM.
    phi = x_ref[3]
    theta = x_ref[4]
    psi = x_ref[5]
    U = x_ref[6]
    V = x_ref[7]
    W = x_ref[8]
    P = x_ref[9]
    Q = x_ref[10]
    R = x_ref[11]
    F_x = x_ref[12]
    F_y = x_ref[13]
    F_z = x_ref[14]

    st = jnp.sin(theta)
    ct = jnp.cos(theta)
    sphi = jnp.sin(phi)
    cphi = jnp.cos(phi)
    spsi = jnp.sin(psi)
    cpsi = jnp.cos(psi)

    ct_inv = 1.0 / ct          # single reciprocal, reused for tan(theta) and xd5
    tt = st * ct_inv           # tan(theta) without a second transcendental

    sphi_st = sphi * st
    cphi_st = cphi * st
    rc_qs = R * cphi + Q * sphi

    # Kinematics (position / attitude rates).
    o_ref[0] = (U * (ct * cpsi)
                + V * (sphi_st * cpsi - cphi * spsi)
                + W * (sphi * spsi + cphi_st * cpsi))
    o_ref[1] = (U * (ct * spsi)
                + V * (sphi_st * spsi + cphi * cpsi)
                + W * (-sphi * cpsi + cphi_st * spsi))
    o_ref[2] = U * st - V * (sphi * ct) - W * (cphi * ct)
    o_ref[3] = P + rc_qs * tt
    o_ref[4] = Q * cphi - R * sphi
    o_ref[5] = rc_qs * ct_inv

    # Body-frame accelerations.
    o_ref[6] = V * R - W * Q - G * st + F_x * INV_UAV_M
    o_ref[7] = -U * R + W * P + G * ct * sphi + F_y * INV_UAV_M
    o_ref[8] = U * Q - V * P + G * ct * cphi + F_z * INV_UAV_M

    # Angular accelerations.
    b0 = L_bar - Q * R * (I_z - I_y) + P * Q * I_xz
    b1 = N_mom - P * Q * (I_y - I_x) - Q * R * I_xz
    b2 = M_mom - P * R * (I_x - I_z) - (P * P - R * R) * I_xz
    o_ref[9] = (b0 * I_z + b1 * I_xz) * INV_DENOM
    o_ref[10] = b2 * INV_I_Y
    o_ref[11] = (b0 * I_xz + b1 * I_x) * INV_DENOM

    # Control-force slots of xdot stay zero (as in the PyTorch module).
    zeros = jnp.zeros_like(U)
    o_ref[12] = zeros
    o_ref[13] = zeros
    o_ref[14] = zeros


def uav_dynamics_forward_fm(t, x_fm, *, block_rows=DEFAULT_BLOCK_ROWS):
    """Fast path. x_fm: feature-major state, shape (15, B) float32 -> (15, B).

    Keep the integrator state in this (15, B) layout across calls so no
    transposes are ever paid.
    """
    del t  # time is unused in the dynamics
    x_fm = jnp.asarray(x_fm, dtype=jnp.float32)
    F, B = x_fm.shape
    assert F == NUM_FEATURES

    rows = pl.cdiv(B, LANES)
    rows8 = pl.cdiv(rows, 8) * 8                 # sublane-dense row count
    br = min(block_rows, rows8)                  # rows per grid step (mult of 8)
    rows_p = pl.cdiv(rows8, br) * br
    b_pad = rows_p * LANES

    if b_pad != B:
        # Zero padding is numerically safe (cos(0)=1, constant denominators).
        x_fm = jnp.pad(x_fm, ((0, 0), (0, b_pad - B)))
    x3 = x_fm.reshape(F, rows_p, LANES)

    out3 = pl.pallas_call(
        uav_dynamics_kernel,
        out_shape=jax.ShapeDtypeStruct((F, rows_p, LANES), jnp.float32),
        grid=(rows_p // br,),
        in_specs=[pl.BlockSpec((F, br, LANES), lambda i: (0, i, 0))],
        out_specs=pl.BlockSpec((F, br, LANES), lambda i: (0, i, 0)),
        compiler_params=pltpu.CompilerParams(
            dimension_semantics=("parallel",),
            vmem_limit_bytes=64 << 20,
        ),
    )(x3)

    out = out3.reshape(F, b_pad)
    if b_pad != B:
        out = out[:, :B]
    return out


def uav_dynamics_forward(t, x, *, block_rows=DEFAULT_BLOCK_ROWS):
    """PyTorch-layout compatible wrapper. x: (batch, 15) -> xdot (batch, 15).

    Pays one relayout each way; prefer uav_dynamics_forward_fm with a
    persistent feature-major state inside an ODE-integrator loop.
    """
    x_fm = jnp.asarray(x, dtype=jnp.float32).T
    return uav_dynamics_forward_fm(t, x_fm, block_rows=block_rows).T


def _reference(x):
    # Pure-JAX reference mirroring the PyTorch code exactly (batch-major).
    x = jnp.asarray(x, jnp.float32)
    phi, theta, psi = x[:, 3], x[:, 4], x[:, 5]
    U, V, W = x[:, 6], x[:, 7], x[:, 8]
    P, Q, R = x[:, 9], x[:, 10], x[:, 11]
    F_x, F_y, F_z = x[:, 12], x[:, 13], x[:, 14]
    st, ct, tt = jnp.sin(theta), jnp.cos(theta), jnp.tan(theta)
    sphi, cphi = jnp.sin(phi), jnp.cos(phi)
    spsi, cpsi = jnp.sin(psi), jnp.cos(psi)
    xdot = jnp.zeros_like(x)
    xdot = xdot.at[:, 0].set(U * (ct * cpsi) + V * (sphi * st * cpsi - cphi * spsi) + W * (sphi * spsi + cphi * st * cpsi))
    xdot = xdot.at[:, 1].set(U * (ct * spsi) + V * (sphi * st * spsi + cphi * cpsi) + W * (-sphi * cpsi + cphi * st * spsi))
    xdot = xdot.at[:, 2].set(U * st - V * (sphi * ct) - W * (cphi * ct))
    xdot = xdot.at[:, 3].set(P + (R * cphi + Q * sphi) * tt)
    xdot = xdot.at[:, 4].set(Q * cphi - R * sphi)
    xdot = xdot.at[:, 5].set((R * cphi + Q * sphi) / ct)
    xdot = xdot.at[:, 6].set(V * R - W * Q - G * st + F_x / UAV_M)
    xdot = xdot.at[:, 7].set(-U * R + W * P + G * ct * sphi + F_y / UAV_M)
    xdot = xdot.at[:, 8].set(U * Q - V * P + G * ct * cphi + F_z / UAV_M)
    b0 = L_bar - Q * R * (I_z - I_y) + P * Q * I_xz
    b1 = N_mom - P * Q * (I_y - I_x) - Q * R * I_xz
    b2 = M_mom - P * R * (I_x - I_z) - (P ** 2 - R ** 2) * I_xz
    xdot = xdot.at[:, 9].set((b0 * I_z + b1 * I_xz) / DENOM)
    xdot = xdot.at[:, 10].set(b2 / I_y)
    xdot = xdot.at[:, 11].set((b0 * I_xz + b1 * I_x) / DENOM)
    return xdot


if __name__ == "__main__":
    # UAVDynamics has no learnable parameters, so nothing to initialize.
    key = jax.random.PRNGKey(0)
    batch = 256
    # state (12) + control forces (3) concatenated along the feature axis.
    x = jax.random.normal(key, (batch, NUM_FEATURES), dtype=jnp.float32) * 0.3
    t = jnp.float32(0.0)
    ref = _reference(x)

    # Recommended path: state held feature-major (15, B) across the ODE loop.
    x_fm = x.T
    out_fm = jax.block_until_ready(uav_dynamics_forward_fm(t, x_fm))
    assert out_fm.shape == (NUM_FEATURES, batch) and out_fm.dtype == jnp.float32
    if not jnp.allclose(out_fm.T, ref, atol=1e-5, rtol=1e-5):
        raise AssertionError("Feature-major Pallas kernel output does not match reference")

    # PyTorch-layout compatibility wrapper.
    out_bm = jax.block_until_ready(uav_dynamics_forward(t, x))
    assert out_bm.shape == x.shape and out_bm.dtype == jnp.float32
    if not jnp.allclose(out_bm, ref, atol=1e-5, rtol=1e-5):
        raise AssertionError("Batch-major Pallas wrapper output does not match reference")

    print("KERNEL_OK")
</pallas_src>

<mosaic_0001>
module attributes {stable_mosaic.version = 11 : i64} {
  func.func @uav_dynamics_kernel(%arg0: i32, %arg1: memref<15x8x128xf32, #tpu.memory_space<vmem>>, %arg2: memref<15x8x128xf32, #tpu.memory_space<vmem>>) attributes {dimension_semantics = [#tpu.dimension_semantics<parallel>], iteration_bounds = array<i64: 1>, scalar_prefetch = 0 : i64, scratch_operands = 0 : i64, tpu.core_type = #tpu.core_type<tc>, window_params = [{transform_indices = @transform_0, window_bounds = array<i64: 15, 8, 128>}, {transform_indices = @transform_1, window_bounds = array<i64: 15, 8, 128>}]} {
    %c3 = arith.constant 3 : index
    %c0 = arith.constant 0 : index
    %c0_0 = arith.constant 0 : index
    %0 = vector.load %arg1[%c3, %c0, %c0_0] : memref<15x8x128xf32, #tpu.memory_space<vmem>>, vector<1x8x128xf32>
    %1 = vector.shape_cast %0 : vector<1x8x128xf32> to vector<8x128xf32>
    %c4 = arith.constant 4 : index
    %c0_1 = arith.constant 0 : index
    %c0_2 = arith.constant 0 : index
    %2 = vector.load %arg1[%c4, %c0_1, %c0_2] : memref<15x8x128xf32, #tpu.memory_space<vmem>>, vector<1x8x128xf32>
    %3 = vector.shape_cast %2 : vector<1x8x128xf32> to vector<8x128xf32>
    %c5 = arith.constant 5 : index
    %c0_3 = arith.constant 0 : index
    %c0_4 = arith.constant 0 : index
    %4 = vector.load %arg1[%c5, %c0_3, %c0_4] : memref<15x8x128xf32, #tpu.memory_space<vmem>>, vector<1x8x128xf32>
    %5 = vector.shape_cast %4 : vector<1x8x128xf32> to vector<8x128xf32>
    %c6 = arith.constant 6 : index
    %c0_5 = arith.constant 0 : index
    %c0_6 = arith.constant 0 : index
    %6 = vector.load %arg1[%c6, %c0_5, %c0_6] : memref<15x8x128xf32, #tpu.memory_space<vmem>>, vector<1x8x128xf32>
    %7 = vector.shape_cast %6 : vector<1x8x128xf32> to vector<8x128xf32>
    %c7 = arith.constant 7 : index
    %c0_7 = arith.constant 0 : index
    %c0_8 = arith.constant 0 : index
    %8 = vector.load %arg1[%c7, %c0_7, %c0_8] : memref<15x8x128xf32, #tpu.memory_space<vmem>>, vector<1x8x128xf32>
    %9 = vector.shape_cast %8 : vector<1x8x128xf32> to vector<8x128xf32>
    %c8 = arith.constant 8 : index
    %c0_9 = arith.constant 0 : index
    %c0_10 = arith.constant 0 : index
    %10 = vector.load %arg1[%c8, %c0_9, %c0_10] : memref<15x8x128xf32, #tpu.memory_space<vmem>>, vector<1x8x128xf32>
    %11 = vector.shape_cast %10 : vector<1x8x128xf32> to vector<8x128xf32>
    %c9 = arith.constant 9 : index
    %c0_11 = arith.constant 0 : index
    %c0_12 = arith.constant 0 : index
    %12 = vector.load %arg1[%c9, %c0_11, %c0_12] : memref<15x8x128xf32, #tpu.memory_space<vmem>>, vector<1x8x128xf32>
    %13 = vector.shape_cast %12 : vector<1x8x128xf32> to vector<8x128xf32>
    %c10 = arith.constant 10 : index
    %c0_13 = arith.constant 0 : index
    %c0_14 = arith.constant 0 : index
    %14 = vector.load %arg1[%c10, %c0_13, %c0_14] : memref<15x8x128xf32, #tpu.memory_space<vmem>>, vector<1x8x128xf32>
    %15 = vector.shape_cast %14 : vector<1x8x128xf32> to vector<8x128xf32>
    %c11 = arith.constant 11 : index
    %c0_15 = arith.constant 0 : index
    %c0_16 = arith.constant 0 : index
    %16 = vector.load %arg1[%c11, %c0_15, %c0_16] : memref<15x8x128xf32, #tpu.memory_space<vmem>>, vector<1x8x128xf32>
    %17 = vector.shape_cast %16 : vector<1x8x128xf32> to vector<8x128xf32>
    %c12 = arith.constant 12 : index
    %c0_17 = arith.constant 0 : index
    %c0_18 = arith.constant 0 : index
    %18 = vector.load %arg1[%c12, %c0_17, %c0_18] : memref<15x8x128xf32, #tpu.memory_space<vmem>>, vector<1x8x128xf32>
    %19 = vector.shape_cast %18 : vector<1x8x128xf32> to vector<8x128xf32>
    %c13 = arith.constant 13 : index
    %c0_19 = arith.constant 0 : index
    %c0_20 = arith.constant 0 : index
    %20 = vector.load %arg1[%c13, %c0_19, %c0_20] : memref<15x8x128xf32, #tpu.memory_space<vmem>>, vector<1x8x128xf32>
    %21 = vector.shape_cast %20 : vector<1x8x128xf32> to vector<8x128xf32>
    %c14 = arith.constant 14 : index
    %c0_21 = arith.constant 0 : index
    %c0_22 = arith.constant 0 : index
    %22 = vector.load %arg1[%c14, %c0_21, %c0_22] : memref<15x8x128xf32, #tpu.memory_space<vmem>>, vector<1x8x128xf32>
    %23 = vector.shape_cast %22 : vector<1x8x128xf32> to vector<8x128xf32>
    %24 = math.sin %3 : vector<8x128xf32>
    %25 = math.cos %3 : vector<8x128xf32>
    %26 = math.sin %1 : vector<8x128xf32>
    %27 = math.cos %1 : vector<8x128xf32>
    %28 = math.sin %5 : vector<8x128xf32>
    %29 = math.cos %5 : vector<8x128xf32>
    %cst = arith.constant 1.000000e+00 : f32
    %30 = vector.broadcast %cst : f32 to vector<8x128xf32>
    %31 = arith.divf %30, %25 : vector<8x128xf32>
    %32 = arith.mulf %24, %31 : vector<8x128xf32>
    %33 = arith.mulf %26, %24 : vector<8x128xf32>
    %34 = arith.mulf %27, %24 : vector<8x128xf32>
    %35 = arith.mulf %17, %27 : vector<8x128xf32>
    %36 = arith.mulf %15, %26 : vector<8x128xf32>
    %37 = arith.addf %35, %36 : vector<8x128xf32>
    %38 = arith.mulf %25, %29 : vector<8x128xf32>
    %39 = arith.mulf %7, %38 : vector<8x128xf32>
    %40 = arith.mulf %33, %29 : vector<8x128xf32>
    %41 = arith.mulf %27, %28 : vector<8x128xf32>
    %42 = arith.subf %40, %41 : vector<8x128xf32>
    %43 = arith.mulf %9, %42 : vector<8x128xf32>
    %44 = arith.addf %39, %43 : vector<8x128xf32>
    %45 = arith.mulf %26, %28 : vector<8x128xf32>
    %46 = arith.mulf %34, %29 : vector<8x128xf32>
    %47 = arith.addf %45, %46 : vector<8x128xf32>
    %48 = arith.mulf %11, %47 : vector<8x128xf32>
    %49 = arith.addf %44, %48 : vector<8x128xf32>
    %c0_23 = arith.constant 0 : index
    %c0_24 = arith.constant 0 : index
    %c0_25 = arith.constant 0 : index
    %50 = vector.load %arg2[%c0_23, %c0_24, %c0_25] : memref<15x8x128xf32, #tpu.memory_space<vmem>>, vector<1x8x128xf32>
    %51 = vector.shape_cast %50 : vector<1x8x128xf32> to vector<8x128xf32>
    %52 = vector.shape_cast %49 : vector<8x128xf32> to vector<1x8x128xf32>
    tpu.vector_store %arg2[%c0_23, %c0_24, %c0_25], %52 {strides = array<i32>} : memref<15x8x128xf32, #tpu.memory_space<vmem>>, vector<1x8x128xf32>,
    %53 = arith.mulf %25, %28 : vector<8x128xf32>
    %54 = arith.mulf %7, %53 : vector<8x128xf32>
    %55 = arith.mulf %33, %28 : vector<8x128xf32>
    %56 = arith.mulf %27, %29 : vector<8x128xf32>
    %57 = arith.addf %55, %56 : vector<8x128xf32>
    %58 = arith.mulf %9, %57 : vector<8x128xf32>
    %59 = arith.addf %54, %58 : vector<8x128xf32>
    %cst_26 = arith.constant 0.000000e+00 : f32
    %60 = vector.broadcast %cst_26 : f32 to vector<8x128xf32>
    %61 = arith.subf %60, %26 : vector<8x128xf32>
    %62 = arith.mulf %61, %29 : vector<8x128xf32>
    %63 = arith.mulf %34, %28 : vector<8x128xf32>
    %64 = arith.addf %62, %63 : vector<8x128xf32>
    %65 = arith.mulf %11, %64 : vector<8x128xf32>
    %66 = arith.addf %59, %65 : vector<8x128xf32>
    %c1 = arith.constant 1 : index
    %c0_27 = arith.constant 0 : index
    %c0_28 = arith.constant 0 : index
    %67 = vector.load %arg2[%c1, %c0_27, %c0_28] : memref<15x8x128xf32, #tpu.memory_space<vmem>>, vector<1x8x128xf32>
    %68 = vector.shape_cast %67 : vector<1x8x128xf32> to vector<8x128xf32>
    %69 = vector.shape_cast %66 : vector<8x128xf32> to vector<1x8x128xf32>
    tpu.vector_store %arg2[%c1, %c0_27, %c0_28], %69 {strides = array<i32>} : memref<15x8x128xf32, #tpu.memory_space<vmem>>, vector<1x8x128xf32>,
    %70 = arith.mulf %7, %24 : vector<8x128xf32>
    %71 = arith.mulf %26, %25 : vector<8x128xf32>
    %72 = arith.mulf %9, %71 : vector<8x128xf32>
    %73 = arith.subf %70, %72 : vector<8x128xf32>
    %74 = arith.mulf %27, %25 : vector<8x128xf32>
    %75 = arith.mulf %11, %74 : vector<8x128xf32>
    %76 = arith.subf %73, %75 : vector<8x128xf32>
    %c2 = arith.constant 2 : index
    %c0_29 = arith.constant 0 : index
    %c0_30 = arith.constant 0 : index
    %77 = vector.load %arg2[%c2, %c0_29, %c0_30] : memref<15x8x128xf32, #tpu.memory_space<vmem>>, vector<1x8x128xf32>
    %78 = vector.shape_cast %77 : vector<1x8x128xf32> to vector<8x128xf32>
    %79 = vector.shape_cast %76 : vector<8x128xf32> to vector<1x8x128xf32>
    tpu.vector_store %arg2[%c2, %c0_29, %c0_30], %79 {strides = array<i32>} : memref<15x8x128xf32, #tpu.memory_space<vmem>>, vector<1x8x128xf32>,
    %80 = arith.mulf %37, %32 : vector<8x128xf32>
    %81 = arith.addf %13, %80 : vector<8x128xf32>
    %c3_31 = arith.constant 3 : index
    %c0_32 = arith.constant 0 : index
    %c0_33 = arith.constant 0 : index
    %82 = vector.load %arg2[%c3_31, %c0_32, %c0_33] : memref<15x8x128xf32, #tpu.memory_space<vmem>>, vector<1x8x128xf32>
    %83 = vector.shape_cast %82 : vector<1x8x128xf32> to vector<8x128xf32>
    %84 = vector.shape_cast %81 : vector<8x128xf32> to vector<1x8x128xf32>
    tpu.vector_store %arg2[%c3_31, %c0_32, %c0_33], %84 {strides = array<i32>} : memref<15x8x128xf32, #tpu.memory_space<vmem>>, vector<1x8x128xf32>,
    %85 = arith.mulf %15, %27 : vector<8x128xf32>
    %86 = arith.mulf %17, %26 : vector<8x128xf32>
    %87 = arith.subf %85, %86 : vector<8x128xf32>
    %c4_34 = arith.constant 4 : index
    %c0_35 = arith.constant 0 : index
    %c0_36 = arith.constant 0 : index
    %88 = vector.load %arg2[%c4_34, %c0_35, %c0_36] : memref<15x8x128xf32, #tpu.memory_space<vmem>>, vector<1x8x128xf32>
    %89 = vector.shape_cast %88 : vector<1x8x128xf32> to vector<8x128xf32>
    %90 = vector.shape_cast %87 : vector<8x128xf32> to vector<1x8x128xf32>
    tpu.vector_store %arg2[%c4_34, %c0_35, %c0_36], %90 {strides = array<i32>} : memref<15x8x128xf32, #tpu.memory_space<vmem>>, vector<1x8x128xf32>,
    %91 = arith.mulf %37, %31 : vector<8x128xf32>
    %c5_37 = arith.constant 5 : index
    %c0_38 = arith.constant 0 : index
    %c0_39 = arith.constant 0 : index
    %92 = vector.load %arg2[%c5_37, %c0_38, %c0_39] : memref<15x8x128xf32, #tpu.memory_space<vmem>>, vector<1x8x128xf32>
    %93 = vector.shape_cast %92 : vector<1x8x128xf32> to vector<8x128xf32>
    %94 = vector.shape_cast %91 : vector<8x128xf32> to vector<1x8x128xf32>
    tpu.vector_store %arg2[%c5_37, %c0_38, %c0_39], %94 {strides = array<i32>} : memref<15x8x128xf32, #tpu.memory_space<vmem>>, vector<1x8x128xf32>,
    %95 = arith.mulf %9, %17 : vector<8x128xf32>
    %96 = arith.mulf %11, %15 : vector<8x128xf32>
    %97 = arith.subf %95, %96 : vector<8x128xf32>
    %cst_40 = arith.constant 9.810000e+00 : f32
    %98 = vector.broadcast %cst_40 : f32 to vector<8x128xf32>
    %99 = arith.mulf %98, %24 : vector<8x128xf32>
    %100 = arith.subf %97, %99 : vector<8x128xf32>
    %cst_41 = arith.constant 0.00333333341 : f32
    %101 = vector.broadcast %cst_41 : f32 to vector<8x128xf32>
    %102 = arith.mulf %19, %101 : vector<8x128xf32>
    %103 = arith.addf %100, %102 : vector<8x128xf32>
    %c6_42 = arith.constant 6 : index
    %c0_43 = arith.constant 0 : index
    %c0_44 = arith.constant 0 : index
    %104 = vector.load %arg2[%c6_42, %c0_43, %c0_44] : memref<15x8x128xf32, #tpu.memory_space<vmem>>, vector<1x8x128xf32>
    %105 = vector.shape_cast %104 : vector<1x8x128xf32> to vector<8x128xf32>
    %106 = vector.shape_cast %103 : vector<8x128xf32> to vector<1x8x128xf32>
    tpu.vector_store %arg2[%c6_42, %c0_43, %c0_44], %106 {strides = array<i32>} : memref<15x8x128xf32, #tpu.memory_space<vmem>>, vector<1x8x128xf32>,
    %cst_45 = arith.constant 0.000000e+00 : f32
    %107 = vector.broadcast %cst_45 : f32 to vector<8x128xf32>
    %108 = arith.subf %107, %7 : vector<8x128xf32>
    %109 = arith.mulf %108, %17 : vector<8x128xf32>
    %110 = arith.mulf %11, %13 : vector<8x128xf32>
    %111 = arith.addf %109, %110 : vector<8x128xf32>
    %cst_46 = arith.constant 9.810000e+00 : f32
    %112 = vector.broadcast %cst_46 : f32 to vector<8x128xf32>
    %113 = arith.mulf %112, %25 : vector<8x128xf32>
    %114 = arith.mulf %113, %26 : vector<8x128xf32>
    %115 = arith.addf %111, %114 : vector<8x128xf32>
    %cst_47 = arith.constant 0.00333333341 : f32
    %116 = vector.broadcast %cst_47 : f32 to vector<8x128xf32>
    %117 = arith.mulf %21, %116 : vector<8x128xf32>
    %118 = arith.addf %115, %117 : vector<8x128xf32>
    %c7_48 = arith.constant 7 : index
    %c0_49 = arith.constant 0 : index
    %c0_50 = arith.constant 0 : index
    %119 = vector.load %arg2[%c7_48, %c0_49, %c0_50] : memref<15x8x128xf32, #tpu.memory_space<vmem>>, vector<1x8x128xf32>
    %120 = vector.shape_cast %119 : vector<1x8x128xf32> to vector<8x128xf32>
    %121 = vector.shape_cast %118 : vector<8x128xf32> to vector<1x8x128xf32>
    tpu.vector_store %arg2[%c7_48, %c0_49, %c0_50], %121 {strides = array<i32>} : memref<15x8x128xf32, #tpu.memory_space<vmem>>, vector<1x8x128xf32>,
    %122 = arith.mulf %7, %15 : vector<8x128xf32>
    %123 = arith.mulf %9, %13 : vector<8x128xf32>
    %124 = arith.subf %122, %123 : vector<8x128xf32>
    %cst_51 = arith.constant 9.810000e+00 : f32
    %125 = vector.broadcast %cst_51 : f32 to vector<8x128xf32>
    %126 = arith.mulf %125, %25 : vector<8x128xf32>
    %127 = arith.mulf %126, %27 : vector<8x128xf32>
    %128 = arith.addf %124, %127 : vector<8x128xf32>
    %cst_52 = arith.constant 0.00333333341 : f32
    %129 = vector.broadcast %cst_52 : f32 to vector<8x128xf32>
    %130 = arith.mulf %23, %129 : vector<8x128xf32>
    %131 = arith.addf %128, %130 : vector<8x128xf32>
    %c8_53 = arith.constant 8 : index
    %c0_54 = arith.constant 0 : index
    %c0_55 = arith.constant 0 : index
    %132 = vector.load %arg2[%c8_53, %c0_54, %c0_55] : memref<15x8x128xf32, #tpu.memory_space<vmem>>, vector<1x8x128xf32>
    %133 = vector.shape_cast %132 : vector<1x8x128xf32> to vector<8x128xf32>
    %134 = vector.shape_cast %131 : vector<8x128xf32> to vector<1x8x128xf32>
    tpu.vector_store %arg2[%c8_53, %c0_54, %c0_55], %134 {strides = array<i32>} : memref<15x8x128xf32, #tpu.memory_space<vmem>>, vector<1x8x128xf32>,
    %135 = arith.mulf %15, %17 : vector<8x128xf32>
    %cst_56 = arith.constant 0.000000e+00 : f32
    %136 = vector.broadcast %cst_56 : f32 to vector<8x128xf32>
    %137 = arith.mulf %135, %136 : vector<8x128xf32>
    %cst_57 = arith.constant 1.000000e+00 : f32
    %138 = vector.broadcast %cst_57 : f32 to vector<8x128xf32>
    %139 = arith.subf %138, %137 : vector<8x128xf32>
    %140 = arith.mulf %13, %15 : vector<8x128xf32>
    %cst_58 = arith.constant 0.000000e+00 : f32
    %141 = vector.broadcast %cst_58 : f32 to vector<8x128xf32>
    %142 = arith.mulf %140, %141 : vector<8x128xf32>
    %143 = arith.addf %139, %142 : vector<8x128xf32>
    %144 = arith.mulf %13, %15 : vector<8x128xf32>
    %cst_59 = arith.constant 0.000000e+00 : f32
    %145 = vector.broadcast %cst_59 : f32 to vector<8x128xf32>
    %146 = arith.mulf %144, %145 : vector<8x128xf32>
    %cst_60 = arith.constant 1.000000e+00 : f32
    %147 = vector.broadcast %cst_60 : f32 to vector<8x128xf32>
    %148 = arith.subf %147, %146 : vector<8x128xf32>
    %149 = arith.mulf %15, %17 : vector<8x128xf32>
    %cst_61 = arith.constant 0.000000e+00 : f32
    %150 = vector.broadcast %cst_61 : f32 to vector<8x128xf32>
    %151 = arith.mulf %149, %150 : vector<8x128xf32>
    %152 = arith.subf %148, %151 : vector<8x128xf32>
    %153 = arith.mulf %13, %17 : vector<8x128xf32>
    %cst_62 = arith.constant 0.000000e+00 : f32
    %154 = vector.broadcast %cst_62 : f32 to vector<8x128xf32>
    %155 = arith.mulf %153, %154 : vector<8x128xf32>
    %cst_63 = arith.constant 1.000000e+00 : f32
    %156 = vector.broadcast %cst_63 : f32 to vector<8x128xf32>
    %157 = arith.subf %156, %155 : vector<8x128xf32>
    %158 = arith.mulf %13, %13 : vector<8x128xf32>
    %159 = arith.mulf %17, %17 : vector<8x128xf32>
    %160 = arith.subf %158, %159 : vector<8x128xf32>
    %cst_64 = arith.constant 0.000000e+00 : f32
    %161 = vector.broadcast %cst_64 : f32 to vector<8x128xf32>
    %162 = arith.mulf %160, %161 : vector<8x128xf32>
    %163 = arith.subf %157, %162 : vector<8x128xf32>
    %cst_65 = arith.constant 1.000000e+00 : f32
    %164 = vector.broadcast %cst_65 : f32 to vector<8x128xf32>
    %165 = arith.mulf %143, %164 : vector<8x128xf32>
    %cst_66 = arith.constant 0.000000e+00 : f32
    %166 = vector.broadcast %cst_66 : f32 to vector<8x128xf32>
    %167 = arith.mulf %152, %166 : vector<8x128xf32>
    %168 = arith.addf %165, %167 : vector<8x128xf32>
    %cst_67 = arith.constant 1.000000e+00 : f32
    %169 = vector.broadcast %cst_67 : f32 to vector<8x128xf32>
    %170 = arith.mulf %168, %169 : vector<8x128xf32>
    %c9_68 = arith.constant 9 : index
    %c0_69 = arith.constant 0 : index
    %c0_70 = arith.constant 0 : index
    %171 = vector.load %arg2[%c9_68, %c0_69, %c0_70] : memref<15x8x128xf32, #tpu.memory_space<vmem>>, vector<1x8x128xf32>
    %172 = vector.shape_cast %171 : vector<1x8x128xf32> to vector<8x128xf32>
    %173 = vector.shape_cast %170 : vector<8x128xf32> to vector<1x8x128xf32>
    tpu.vector_store %arg2[%c9_68, %c0_69, %c0_70], %173 {strides = array<i32>} : memref<15x8x128xf32, #tpu.memory_space<vmem>>, vector<1x8x128xf32>,
    %cst_71 = arith.constant 1.000000e+00 : f32
    %174 = vector.broadcast %cst_71 : f32 to vector<8x128xf32>
    %175 = arith.mulf %163, %174 : vector<8x128xf32>
    %c10_72 = arith.constant 10 : index
    %c0_73 = arith.constant 0 : index
    %c0_74 = arith.constant 0 : index
    %176 = vector.load %arg2[%c10_72, %c0_73, %c0_74] : memref<15x8x128xf32, #tpu.memory_space<vmem>>, vector<1x8x128xf32>
    %177 = vector.shape_cast %176 : vector<1x8x128xf32> to vector<8x128xf32>
    %178 = vector.shape_cast %175 : vector<8x128xf32> to vector<1x8x128xf32>
    tpu.vector_store %arg2[%c10_72, %c0_73, %c0_74], %178 {strides = array<i32>} : memref<15x8x128xf32, #tpu.memory_space<vmem>>, vector<1x8x128xf32>,
    %cst_75 = arith.constant 0.000000e+00 : f32
    %179 = vector.broadcast %cst_75 : f32 to vector<8x128xf32>
    %180 = arith.mulf %143, %179 : vector<8x128xf32>
    %cst_76 = arith.constant 1.000000e+00 : f32
    %181 = vector.broadcast %cst_76 : f32 to vector<8x128xf32>
    %182 = arith.mulf %152, %181 : vector<8x128xf32>
    %183 = arith.addf %180, %182 : vector<8x128xf32>
    %cst_77 = arith.constant 1.000000e+00 : f32
    %184 = vector.broadcast %cst_77 : f32 to vector<8x128xf32>
    %185 = arith.mulf %183, %184 : vector<8x128xf32>
    %c11_78 = arith.constant 11 : index
    %c0_79 = arith.constant 0 : index
    %c0_80 = arith.constant 0 : index
    %186 = vector.load %arg2[%c11_78, %c0_79, %c0_80] : memref<15x8x128xf32, #tpu.memory_space<vmem>>, vector<1x8x128xf32>
    %187 = vector.shape_cast %186 : vector<1x8x128xf32> to vector<8x128xf32>
    %188 = vector.shape_cast %185 : vector<8x128xf32> to vector<1x8x128xf32>
    tpu.vector_store %arg2[%c11_78, %c0_79, %c0_80], %188 {strides = array<i32>} : memref<15x8x128xf32, #tpu.memory_space<vmem>>, vector<1x8x128xf32>,
    %cst_81 = arith.constant 0.000000e+00 : f32
    %189 = vector.broadcast %cst_81 : f32 to vector<8x128xf32>
    %c12_82 = arith.constant 12 : index
    %c0_83 = arith.constant 0 : index
    %c0_84 = arith.constant 0 : index
    %190 = vector.load %arg2[%c12_82, %c0_83, %c0_84] : memref<15x8x128xf32, #tpu.memory_space<vmem>>, vector<1x8x128xf32>
    %191 = vector.shape_cast %190 : vector<1x8x128xf32> to vector<8x128xf32>
    %192 = vector.shape_cast %189 : vector<8x128xf32> to vector<1x8x128xf32>
    tpu.vector_store %arg2[%c12_82, %c0_83, %c0_84], %192 {strides = array<i32>} : memref<15x8x128xf32, #tpu.memory_space<vmem>>, vector<1x8x128xf32>,
    %c13_85 = arith.constant 13 : index
    %c0_86 = arith.constant 0 : index
    %c0_87 = arith.constant 0 : index
    %193 = vector.load %arg2[%c13_85, %c0_86, %c0_87] : memref<15x8x128xf32, #tpu.memory_space<vmem>>, vector<1x8x128xf32>
    %194 = vector.shape_cast %193 : vector<1x8x128xf32> to vector<8x128xf32>
    %195 = vector.shape_cast %189 : vector<8x128xf32> to vector<1x8x128xf32>
    tpu.vector_store %arg2[%c13_85, %c0_86, %c0_87], %195 {strides = array<i32>} : memref<15x8x128xf32, #tpu.memory_space<vmem>>, vector<1x8x128xf32>,
    %c14_88 = arith.constant 14 : index
    %c0_89 = arith.constant 0 : index
    %c0_90 = arith.constant 0 : index
    %196 = vector.load %arg2[%c14_88, %c0_89, %c0_90] : memref<15x8x128xf32, #tpu.memory_space<vmem>>, vector<1x8x128xf32>
    %197 = vector.shape_cast %196 : vector<1x8x128xf32> to vector<8x128xf32>
    %198 = vector.shape_cast %189 : vector<8x128xf32> to vector<1x8x128xf32>
    tpu.vector_store %arg2[%c14_88, %c0_89, %c0_90], %198 {strides = array<i32>} : memref<15x8x128xf32, #tpu.memory_space<vmem>>, vector<1x8x128xf32>,
    return
  }
  func.func @transform_0(%arg0: i32) -> (i32, i32, i32) {
    %c0_i32 = arith.constant 0 : i32
    %c0_i32_0 = arith.constant 0 : i32
    %c0_i32_1 = arith.constant 0 : i32
    return %c0_i32, %arg0, %c0_i32_0 : i32, i32, i32
  }
  func.func @transform_1(%arg0: i32) -> (i32, i32, i32) {
    %c0_i32 = arith.constant 0 : i32
    %c0_i32_0 = arith.constant 0 : i32
    %c0_i32_1 = arith.constant 0 : i32
    return %c0_i32, %arg0, %c0_i32_0 : i32, i32, i32
  }
}

</mosaic_0001>

<llo_original>
// kernel: tpu_custom_call.1
$region0: #{tpu_custom_call.1}
  #allocation0 [shape = 'u32[]', space=smem, size = 0x4, offset = 0x4, fixed_abs, tag = 'smem constant byte address 0x4 - core index']
  #allocation1 [shape = 'u32[144,128]{1,0:T(1,128)}', space=vmem, size = 0x12000, scoped, tag = 'internal scratch']
  %s0 = inlined_call_operand.hbm [shape: f32[15,8,128], index: 0, kind: input, shape index: {}]
  %s1 = inlined_call_operand.hbm [shape: f32[15,8,128], index: 1, kind: output, shape index: {}]
  %s2 = sld [smem:[#allocation0]]
  $region18: #{tpu_custom_call.1} parent=0
    _
  %s4 = ssub.s32 1, %s2
  %s5 = scalar_select 0, %s4, %s2
  $region1: #{tpu_custom_call.1} parent=0
    #allocation2 [shape = 'u8[61440]{0}', space=vmem, size = 0xf000, scoped, tag = 'input window, operand 0, single buffered']
    #allocation3 [shape = 's32[1]{0}', space=sflag, size = 0x4, scoped, tag = 'scoped memory for tpu_custom_call.1']
    #allocation4 [shape = 's32[1]{0}', space=sflag, size = 0x4, scoped, tag = 'scoped memory for tpu_custom_call.1']
    #allocation5 [shape = 'u8[61440]{0}', space=vmem, size = 0xf000, scoped, tag = 'output window, operand 0, single buffered']
    %6 = vsyncpa [#allocation3], 0
    %7 = vsyncpa [#allocation4], 0
    // Predicated region
    $region2: #{tpu_custom_call.1} parent=1 // pred_check
      _
    $region3: #{tpu_custom_call.1} parent=1 // pred_check_branch
      %9 = sbr.rel (0) target = $region5
    $region4: #{tpu_custom_call.1} parent=1 // pred_region
      %s11 = ssub.s32 1920, 1920
      %12 = vsyncadd [#allocation3], %s11
      %s13 = sshll.u32 [#allocation2], 4
      %s14 = int_to_ptr.vmem [resolvable:$true] %s13
      %19 = dma.hbm_to_vmem [thread:$0]  %s0, 1920, %s14, [#allocation3], 128, 128, 8
    $region5: #{tpu_custom_call.1} parent=1 // pred_fallthru
      _
    // Predicated region
    $region6: #{tpu_custom_call.1} parent=1 // pred_check
      _
    $region7: #{tpu_custom_call.1} parent=1 // pred_check_branch
      %21 = sbr.rel (0) target = $region9
    $region8: #{tpu_custom_call.1} parent=1 // pred_region
      %22 = dma.done [#allocation3], 1920
    $region9: #{tpu_custom_call.1} parent=1 // pred_fallthru
      _
    %s23 = scalar_lea.vmem [#allocation2], 24
    %v24 = vld [vmem:[%s23] sm:$0xff]
    %s25 = scalar_lea.vmem [#allocation2], 32
    %v26 = vld [vmem:[%s25] sm:$0xff]
    %s27 = scalar_lea.vmem [#allocation2], 40
    %v28 = vld [vmem:[%s27] sm:$0xff]
    %s29 = scalar_lea.vmem [#allocation2], 48
    %v30 = vld [vmem:[%s29] sm:$0xff]
    %s31 = scalar_lea.vmem [#allocation2], 56
    %v32 = vld [vmem:[%s31] sm:$0xff]
    %s33 = scalar_lea.vmem [#allocation2], 64
    %v34 = vld [vmem:[%s33] sm:$0xff]
    %s35 = scalar_lea.vmem [#allocation2], 72
    %v36 = vld [vmem:[%s35] sm:$0xff]
    %s37 = scalar_lea.vmem [#allocation2], 80
    %v38 = vld [vmem:[%s37] sm:$0xff]
    %s39 = scalar_lea.vmem [#allocation2], 88
    %v40 = vld [vmem:[%s39] sm:$0xff]
    %s41 = scalar_lea.vmem [#allocation2], 96
    %v42 = vld [vmem:[%s41] sm:$0xff]
    %s43 = scalar_lea.vmem [#allocation2], 104
    %v44 = vld [vmem:[%s43] sm:$0xff]
    %s45 = scalar_lea.vmem [#allocation2], 112
    %v46 = vld [vmem:[%s45] sm:$0xff]
    %v47 = vand.u32 2147483647, %v26
    %vm48 = vcmp.le.f32.partialorder %v47, 0.7853982
    %vm49 = vcmp.lt.s32.totalorder %v26, 0
    %v50 = vand.u32 %v26, 2139095040
    %v51 = vshrl.u32 %v50, 23
    %v52 = vsub.s32 %v51, 127
    %v53 = vand.u32 2147483647, %v26
    %v54 = vand.u32 %v53, 8388607
    %v55 = vor.u32 %v54, 8388608
    %v56 = vsub.s32 0, %v55
    %v57 = vadd.s32 %v52, 1
    %vm58 = vcmp.gt.s32.totalorder %v57, 0
    %v59 = vsel %vm58, %v57, 0
    %v60 = vshrl.u32 %v59, 5
    %v61 = vand.u32 %v59, 31
    %v62 = vsub.s32 32, %v61
    %v63 = vshrl.u32 683565275, %v62
    %v64 = vshll.u32 683565275, %v61
    %v65 = vshrl.u32 2475754826, %v62
    %v66 = vor.u32 %v64, %v65
    %v67 = vshll.u32 2475754826, %v61
    %v68 = vshrl.u32 2131351028, %v62
    %v69 = vor.u32 %v67, %v68
    %v70 = vshll.u32 2131351028, %v61
    %v71 = vshrl.u32 2102212464, %v62
    %v72 = vor.u32 %v70, %v71
    %v73 = vshll.u32 2102212464, %v61
    %v74 = vshrl.u32 920167782, %v62
    %v75 = vor.u32 %v73, %v74
    %v76 = vshll.u32 920167782, %v61
    %v77 = vshrl.u32 1326507024, %v62
    %v78 = vor.u32 %v76, %v77
    %vm79 = vcmp.lt.s32.totalorder %v60, 1
    %vm80 = vcmp.lt.s32.totalorder %v60, 2
    %vm81 = vcmp.lt.s32.totalorder %v60, 3
    %vm82 = vcmp.lt.s32.totalorder %v60, 4
    %v83 = vsel %vm79, %v63, %v66
    %v84 = vsel %vm82, %v72, 2102212464
    %v85 = vsel %vm81, %v69, %v84
    %v86 = vsel %vm80, %v83, %v85
    %v87 = vsel %vm79, %v66, %v69
    %v88 = vsel %vm82, %v75, 920167782
    %v89 = vsel %vm81, %v72, %v88
    %v90 = vsel %vm80, %v87, %v89
    %v91 = vsel %vm79, %v69, %v72
    %v92 = vsel %vm82, %v78, 1326507024
    %v93 = vsel %vm81, %v75, %v92
    %v94 = vsel %vm80, %v91, %v93
    %v95 = vshll.u32 %v55, 8
    %v96 = vmul.u32.u64.compose %v95, %v94
    %v97 = vextract.low.u32 %v96
    %v98 = vextract.high.u32 %v96
    %v99 = vmul.u32.u64.compose %v95, %v90
    %v100 = vextract.low.u32 %v99
    %v101 = vextract.high.u32 %v99
    %v102 = vmul.u32 %v95, %v86
    %v103 = vadd.s32 %v98, %v100
    %vm104 = vc.u32 %v98, %v100
    %v105 = vadd.s32 %v101, 1
    %v106 = vsel %vm104, %v105, %v101
    %v107 = vadd.s32 %v102, %v106
    %v108 = vadd.s32 %v107, 536870912
    %v109 = vshrl.u32 %v108, 30
    %v110 = vshll.u32 %v109, 30
    %v111 = vsub.s32 %v107, %v110
    %vm112 = vcmp.lt.s32.totalorder %v111, 0
    %v113 = vsub.s32 0, %v111
    %v114 = vsel %vm112, %v113, %v111
    %v115 = vclz %v114
    %v116 = vsub.s32 %v115, 2
    %vm117 = vcmp.gt.s32.totalorder 0, %v116
    %v118 = vsel %vm117, 0, %v116
    %v119 = vsub.s32 32, %v118
    %v120 = vshll.u32 %v111, %v118
    %v121 = vshrl.u32 %v103, %v119
    %v122 = vor.u32 %v120, %v121
    %v123 = vsub.s32 4294967266, %v118
    %v124 = vadd.s32 %v123, 127
    %v125 = vshll.u32 %v124, 23
    %v126 = vor.u32 4788187, %v125
    %v127 = vand.u32 2147483647, %v126
    %v129 = vcvt.s32.f32 %v122
    %v130 = vmul.f32 %v129, %v127
    %v131 = vxor.u32 %v130, 2147483648
    %v132 = vsel %vm49, %v131, %v130
    %v133 = vsub.s32 4, %v109
    %v134 = vsel %vm49, %v133, %v109
    %v135 = vsel %vm48, %v26, %v132
    %v136 = vsel %vm48, 0, %v134
    %v137 = vcosq.f32.pop %v135
    %v138 = vsinq.f32.pop %v135
    %vm139 = vweird.f32 %v26
    %v140 = vadd.s32 %v136, 3
    %v141 = vand.u32 %v140, 3
    %vm142 = vcmp.lt.s32.totalorder %v141, 2
    %vm143 = vcmp.eq.s32.totalorder %v141, 0
    %v144 = vxor.u32 %v138, 2147483648
    %v145 = vsel %vm143, %v137, %v144
    %vm146 = vcmp.eq.s32.totalorder %v141, 2
    %v147 = vxor.u32 %v137, 2147483648
    %v148 = vsel %vm146, %v147, %v138
    %v149 = vsel %vm142, %v145, %v148
    %v150 = vsel %vm139, nan, %v149
    %v151 = vand.u32 2147483647, %v26
    %vm152 = vcmp.le.f32.partialorder %v151, 0.7853982
    %vm153 = vcmp.lt.s32.totalorder %v26, 0
    %v154 = vand.u32 %v26, 2139095040
    %v155 = vshrl.u32 %v154, 23
    %v156 = vsub.s32 %v155, 127
    %v157 = vand.u32 2147483647, %v26
    %v158 = vand.u32 %v157, 8388607
    %v159 = vor.u32 %v158, 8388608
    %v160 = vsub.s32 0, %v159
    %v161 = vadd.s32 %v156, 1
    %vm162 = vcmp.gt.s32.totalorder %v161, 0
    %v163 = vsel %vm162, %v161, 0
    %v164 = vshrl.u32 %v163, 5
    %v165 = vand.u32 %v163, 31
    %v166 = vsub.s32 32, %v165
    %v167 = vshrl.u32 683565275, %v166
    %v168 = vshll.u32 683565275, %v165
    %v169 = vshrl.u32 2475754826, %v166
    %v170 = vor.u32 %v168, %v169
    %v171 = vshll.u32 2475754826, %v165
    %v172 = vshrl.u32 2131351028, %v166
    %v173 = vor.u32 %v171, %v172
    %v174 = vshll.u32 2131351028, %v165
    %v175 = vshrl.u32 2102212464, %v166
    %v176 = vor.u32 %v174, %v175
    %v177 = vshll.u32 2102212464, %v165
    %v178 = vshrl.u32 920167782, %v166
    %v179 = vor.u32 %v177, %v178
    %v180 = vshll.u32 920167782, %v165
    %v181 = vshrl.u32 1326507024, %v166
    %v182 = vor.u32 %v180, %v181
    %vm183 = vcmp.lt.s32.totalorder %v164, 1
    %vm184 = vcmp.lt.s32.totalorder %v164, 2
    %vm185 = vcmp.lt.s32.totalorder %v164, 3
    %vm186 = vcmp.lt.s32.totalorder %v164, 4
    %v187 = vsel %vm183, %v167, %v170
    %v188 = vsel %vm186, %v176, 2102212464
    %v189 = vsel %vm185, %v173, %v188
    %v190 = vsel %vm184, %v187, %v189
    %v191 = vsel %vm183, %v170, %v173
    %v192 = vsel %vm186, %v179, 920167782
    %v193 = vsel %vm185, %v176, %v192
    %v194 = vsel %vm184, %v191, %v193
    %v195 = vsel %vm183, %v173, %v176
    %v196 = vsel %vm186, %v182, 1326507024
    %v197 = vsel %vm185, %v179, %v196
    %v198 = vsel %vm184, %v195, %v197
    %v199 = vshll.u32 %v159, 8
    %v200 = vmul.u32.u64.compose %v199, %v198
    %v201 = vextract.low.u32 %v200
    %v202 = vextract.high.u32 %v200
    %v203 = vmul.u32.u64.compose %v199, %v194
    %v204 = vextract.low.u32 %v203
    %v205 = vextract.high.u32 %v203
    %v206 = vmul.u32 %v199, %v190
    %v207 = vadd.s32 %v202, %v204
    %vm208 = vc.u32 %v202, %v204
    %v209 = vadd.s32 %v205, 1
    %v210 = vsel %vm208, %v209, %v205
    %v211 = vadd.s32 %v206, %v210
    %v212 = vadd.s32 %v211, 536870912
    %v213 = vshrl.u32 %v212, 30
    %v214 = vshll.u32 %v213, 30
    %v215 = vsub.s32 %v211, %v214
    %vm216 = vcmp.lt.s32.totalorder %v215, 0
    %v217 = vsub.s32 0, %v215
    %v218 = vsel %vm216, %v217, %v215
    %v219 = vclz %v218
    %v220 = vsub.s32 %v219, 2
    %vm221 = vcmp.gt.s32.totalorder 0, %v220
    %v222 = vsel %vm221, 0, %v220
    %v223 = vsub.s32 32, %v222
    %v224 = vshll.u32 %v215, %v222
    %v225 = vshrl.u32 %v207, %v223
    %v226 = vor.u32 %v224, %v225
    %v227 = vsub.s32 4294967266, %v222
    %v228 = vadd.s32 %v227, 127
    %v229 = vshll.u32 %v228, 23
    %v230 = vor.u32 4788187, %v229
    %v231 = vand.u32 2147483647, %v230
    %v233 = vcvt.s32.f32 %v226
    %v234 = vmul.f32 %v233, %v231
    %v235 = vxor.u32 %v234, 2147483648
    %v236 = vsel %vm153, %v235, %v234
    %v237 = vsub.s32 4, %v213
    %v238 = vsel %vm153, %v237, %v213
    %v239 = vsel %vm152, %v26, %v236
    %v240 = vsel %vm152, 0, %v238
    %v241 = vcosq.f32.pop %v239
    %v242 = vsinq.f32.pop %v239
    %vm243 = vweird.f32 %v26
    %v244 = vand.u32 %v240, 3
    %vm245 = vcmp.lt.s32.totalorder %v244, 2
    %vm246 = vcmp.eq.s32.totalorder %v244, 0
    %v247 = vxor.u32 %v242, 2147483648
    %v248 = vsel %vm246, %v241, %v247
    %vm249 = vcmp.eq.s32.totalorder %v244, 2
    %v250 = vxor.u32 %v241, 2147483648
    %v251 = vsel %vm249, %v250, %v242
    %v252 = vsel %vm245, %v248, %v251
    %v253 = vsel %vm243, nan, %v252
    %v254 = vand.u32 2147483647, %v24
    %vm255 = vcmp.le.f32.partialorder %v254, 0.7853982
    %vm256 = vcmp.lt.s32.totalorder %v24, 0
    %v257 = vand.u32 %v24, 2139095040
    %v258 = vshrl.u32 %v257, 23
    %v259 = vsub.s32 %v258, 127
    %v260 = vand.u32 2147483647, %v24
    %v261 = vand.u32 %v260, 8388607
    %v262 = vor.u32 %v261, 8388608
    %v263 = vsub.s32 0, %v262
    %v264 = vadd.s32 %v259, 1
    %vm265 = vcmp.gt.s32.totalorder %v264, 0
    %v266 = vsel %vm265, %v264, 0
    %v267 = vshrl.u32 %v266, 5
    %v268 = vand.u32 %v266, 31
    %v269 = vsub.s32 32, %v268
    %v270 = vshrl.u32 683565275, %v269
    %v271 = vshll.u32 683565275, %v268
    %v272 = vshrl.u32 2475754826, %v269
    %v273 = vor.u32 %v271, %v272
    %v274 = vshll.u32 2475754826, %v268
    %v275 = vshrl.u32 2131351028, %v269
    %v276 = vor.u32 %v274, %v275
    %v277 = vshll.u32 2131351028, %v268
    %v278 = vshrl.u32 2102212464, %v269
    %v279 = vor.u32 %v277, %v278
    %v280 = vshll.u32 2102212464, %v268
    %v281 = vshrl.u32 920167782, %v269
    %v282 = vor.u32 %v280, %v281
    %v283 = vshll.u32 920167782, %v268
    %v284 = vshrl.u32 1326507024, %v269
    %v285 = vor.u32 %v283, %v284
    %vm286 = vcmp.lt.s32.totalorder %v267, 1
    %vm287 = vcmp.lt.s32.totalorder %v267, 2
    %vm288 = vcmp.lt.s32.totalorder %v267, 3
    %vm289 = vcmp.lt.s32.totalorder %v267, 4
    %v290 = vsel %vm286, %v270, %v273
    %v291 = vsel %vm289, %v279, 2102212464
    %v292 = vsel %vm288, %v276, %v291
    %v293 = vsel %vm287, %v290, %v292
    %v294 = vsel %vm286, %v273, %v276
    %v295 = vsel %vm289, %v282, 920167782
    %v296 = vsel %vm288, %v279, %v295
    %v297 = vsel %vm287, %v294, %v296
    %v298 = vsel %vm286, %v276, %v279
    %v299 = vsel %vm289, %v285, 1326507024
    %v300 = vsel %vm288, %v282, %v299
    %v301 = vsel %vm287, %v298, %v300
    %v302 = vshll.u32 %v262, 8
    %v303 = vmul.u32.u64.compose %v302, %v301
    %v304 = vextract.low.u32 %v303
    %v305 = vextract.high.u32 %v303
    %v306 = vmul.u32.u64.compose %v302, %v297
    %v307 = vextract.low.u32 %v306
    %v308 = vextract.high.u32 %v306
    %v309 = vmul.u32 %v302, %v293
    %v310 = vadd.s32 %v305, %v307
    %vm311 = vc.u32 %v305, %v307
    %v312 = vadd.s32 %v308, 1
    %v313 = vsel %vm311, %v312, %v308
    %v314 = vadd.s32 %v309, %v313
    %v315 = vadd.s32 %v314, 536870912
    %v316 = vshrl.u32 %v315, 30
    %v317 = vshll.u32 %v316, 30
    %v318 = vsub.s32 %v314, %v317
    %vm319 = vcmp.lt.s32.totalorder %v318, 0
    %v320 = vsub.s32 0, %v318
    %v321 = vsel %vm319, %v320, %v318
    %v322 = vclz %v321
    %v323 = vsub.s32 %v322, 2
    %vm324 = vcmp.gt.s32.totalorder 0, %v323
    %v325 = vsel %vm324, 0, %v323
    %v326 = vsub.s32 32, %v325
    %v327 = vshll.u32 %v318, %v325
    %v328 = vshrl.u32 %v310, %v326
    %v329 = vor.u32 %v327, %v328
    %v330 = vsub.s32 4294967266, %v325
    %v331 = vadd.s32 %v330, 127
    %v332 = vshll.u32 %v331, 23
    %v333 = vor.u32 4788187, %v332
    %v334 = vand.u32 2147483647, %v333
    %v336 = vcvt.s32.f32 %v329
    %v337 = vmul.f32 %v336, %v334
    %v338 = vxor.u32 %v337, 2147483648
    %v339 = vsel %vm256, %v338, %v337
    %v340 = vsub.s32 4, %v316
    %v341 = vsel %vm256, %v340, %v316
    %v342 = vsel %vm255, %v24, %v339
    %v343 = vsel %vm255, 0, %v341
    %v344 = vcosq.f32.pop %v342
    %v345 = vsinq.f32.pop %v342
    %vm346 = vweird.f32 %v24
    %v347 = vadd.s32 %v343, 3
    %v348 = vand.u32 %v347, 3
    %vm349 = vcmp.lt.s32.totalorder %v348, 2
    %vm350 = vcmp.eq.s32.totalorder %v348, 0
    %v351 = vxor.u32 %v345, 2147483648
    %v352 = vsel %vm350, %v344, %v351
    %vm353 = vcmp.eq.s32.totalorder %v348, 2
    %v354 = vxor.u32 %v344, 2147483648
    %v355 = vsel %vm353, %v354, %v345
    %v356 = vsel %vm349, %v352, %v355
    %v357 = vsel %vm346, nan, %v356
    %v358 = vand.u32 2147483647, %v24
    %vm359 = vcmp.le.f32.partialorder %v358, 0.7853982
    %vm360 = vcmp.lt.s32.totalorder %v24, 0
    %v361 = vand.u32 %v24, 2139095040
    %v362 = vshrl.u32 %v361, 23
    %v363 = vsub.s32 %v362, 127
    %v364 = vand.u32 2147483647, %v24
    %v365 = vand.u32 %v364, 8388607
    %v366 = vor.u32 %v365, 8388608
    %v367 = vsub.s32 0, %v366
    %v368 = vadd.s32 %v363, 1
    %vm369 = vcmp.gt.s32.totalorder %v368, 0
    %v370 = vsel %vm369, %v368, 0
    %v371 = vshrl.u32 %v370, 5
    %v372 = vand.u32 %v370, 31
    %v373 = vsub.s32 32, %v372
    %v374 = vshrl.u32 683565275, %v373
    %v375 = vshll.u32 683565275, %v372
    %v376 = vshrl.u32 2475754826, %v373
    %v377 = vor.u32 %v375, %v376
    %v378 = vshll.u32 2475754826, %v372
    %v379 = vshrl.u32 2131351028, %v373
    %v380 = vor.u32 %v378, %v379
    %v381 = vshll.u32 2131351028, %v372
    %v382 = vshrl.u32 2102212464, %v373
    %v383 = vor.u32 %v381, %v382
    %v384 = vshll.u32 2102212464, %v372
    %v385 = vshrl.u32 920167782, %v373
    %v386 = vor.u32 %v384, %v385
    %v387 = vshll.u32 920167782, %v372
    %v388 = vshrl.u32 1326507024, %v373
    %v389 = vor.u32 %v387, %v388
    %vm390 = vcmp.lt.s32.totalorder %v371, 1
    %vm391 = vcmp.lt.s32.totalorder %v371, 2
    %vm392 = vcmp.lt.s32.totalorder %v371, 3
    %vm393 = vcmp.lt.s32.totalorder %v371, 4
    %v394 = vsel %vm390, %v374, %v377
    %v395 = vsel %vm393, %v383, 2102212464
    %v396 = vsel %vm392, %v380, %v395
    %v397 = vsel %vm391, %v394, %v396
    %v398 = vsel %vm390, %v377, %v380
    %v399 = vsel %vm393, %v386, 920167782
    %v400 = vsel %vm392, %v383, %v399
    %v401 = vsel %vm391, %v398, %v400
    %v402 = vsel %vm390, %v380, %v383
    %v403 = vsel %vm393, %v389, 1326507024
    %v404 = vsel %vm392, %v386, %v403
    %v405 = vsel %vm391, %v402, %v404
    %v406 = vshll.u32 %v366, 8
    %v407 = vmul.u32.u64.compose %v406, %v405
    %v408 = vextract.low.u32 %v407
    %v409 = vextract.high.u32 %v407
    %v410 = vmul.u32.u64.compose %v406, %v401
    %v411 = vextract.low.u32 %v410
    %v412 = vextract.high.u32 %v410
    %v413 = vmul.u32 %v406, %v397
    %v414 = vadd.s32 %v409, %v411
    %vm415 = vc.u32 %v409, %v411
    %v416 = vadd.s32 %v412, 1
    %v417 = vsel %vm415, %v416, %v412
    %v418 = vadd.s32 %v413, %v417
    %v419 = vadd.s32 %v418, 536870912
    %v420 = vshrl.u32 %v419, 30
    %v421 = vshll.u32 %v420, 30
    %v422 = vsub.s32 %v418, %v421
    %vm423 = vcmp.lt.s32.totalorder %v422, 0
    %v424 = vsub.s32 0, %v422
    %v425 = vsel %vm423, %v424, %v422
    %v426 = vclz %v425
    %v427 = vsub.s32 %v426, 2
    %vm428 = vcmp.gt.s32.totalorder 0, %v427
    %v429 = vsel %vm428, 0, %v427
    %v430 = vsub.s32 32, %v429
    %v431 = vshll.u32 %v422, %v429
    %v432 = vshrl.u32 %v414, %v430
    %v433 = vor.u32 %v431, %v432
    %v434 = vsub.s32 4294967266, %v429
    %v435 = vadd.s32 %v434, 127
    %v436 = vshll.u32 %v435, 23
    %v437 = vor.u32 4788187, %v436
    %v438 = vand.u32 2147483647, %v437
    %v440 = vcvt.s32.f32 %v433
    %v441 = vmul.f32 %v440, %v438
    %v442 = vxor.u32 %v441, 2147483648
    %v443 = vsel %vm360, %v442, %v441
    %v444 = vsub.s32 4, %v420
    %v445 = vsel %vm360, %v444, %v420
    %v446 = vsel %vm359, %v24, %v443
    %v447 = vsel %vm359, 0, %v445
    %v448 = vcosq.f32.pop %v446
    %v449 = vsinq.f32.pop %v446
    %vm450 = vweird.f32 %v24
    %v451 = vand.u32 %v447, 3
    %vm452 = vcmp.lt.s32.totalorder %v451, 2
    %vm453 = vcmp.eq.s32.totalorder %v451, 0
    %v454 = vxor.u32 %v449, 2147483648
    %v455 = vsel %vm453, %v448, %v454
    %vm456 = vcmp.eq.s32.totalorder %v451, 2
    %v457 = vxor.u32 %v448, 2147483648
    %v458 = vsel %vm456, %v457, %v449
    %v459 = vsel %vm452, %v455, %v458
    %v460 = vsel %vm450, nan, %v459
    %v461 = vand.u32 2147483647, %v28
    %vm462 = vcmp.le.f32.partialorder %v461, 0.7853982
    %vm463 = vcmp.lt.s32.totalorder %v28, 0
    %v464 = vand.u32 %v28, 2139095040
    %v465 = vshrl.u32 %v464, 23
    %v466 = vsub.s32 %v465, 127
    %v467 = vand.u32 2147483647, %v28
    %v468 = vand.u32 %v467, 8388607
    %v469 = vor.u32 %v468, 8388608
    %v470 = vsub.s32 0, %v469
    %v471 = vadd.s32 %v466, 1
    %vm472 = vcmp.gt.s32.totalorder %v471, 0
    %v473 = vsel %vm472, %v471, 0
    %v474 = vshrl.u32 %v473, 5
    %v475 = vand.u32 %v473, 31
    %v476 = vsub.s32 32, %v475
    %v477 = vshrl.u32 683565275, %v476
    %v478 = vshll.u32 683565275, %v475
    %v479 = vshrl.u32 2475754826, %v476
    %v480 = vor.u32 %v478, %v479
    %v481 = vshll.u32 2475754826, %v475
    %v482 = vshrl.u32 2131351028, %v476
    %v483 = vor.u32 %v481, %v482
    %v484 = vshll.u32 2131351028, %v475
    %v485 = vshrl.u32 2102212464, %v476
    %v486 = vor.u32 %v484, %v485
    %v487 = vshll.u32 2102212464, %v475
    %v488 = vshrl.u32 920167782, %v476
    %v489 = vor.u32 %v487, %v488
    %v490 = vshll.u32 920167782, %v475
    %v491 = vshrl.u32 1326507024, %v476
    %v492 = vor.u32 %v490, %v491
    %vm493 = vcmp.lt.s32.totalorder %v474, 1
    %vm494 = vcmp.lt.s32.totalorder %v474, 2
    %vm495 = vcmp.lt.s32.totalorder %v474, 3
    %vm496 = vcmp.lt.s32.totalorder %v474, 4
    %v497 = vsel %vm493, %v477, %v480
    %v498 = vsel %vm496, %v486, 2102212464
    %v499 = vsel %vm495, %v483, %v498
    %v500 = vsel %vm494, %v497, %v499
    %v501 = vsel %vm493, %v480, %v483
    %v502 = vsel %vm496, %v489, 920167782
    %v503 = vsel %vm495, %v486, %v502
    %v504 = vsel %vm494, %v501, %v503
    %v505 = vsel %vm493, %v483, %v486
    %v506 = vsel %vm496, %v492, 1326507024
    %v507 = vsel %vm495, %v489, %v506
    %v508 = vsel %vm494, %v505, %v507
    %v509 = vshll.u32 %v469, 8
    %v510 = vmul.u32.u64.compose %v509, %v508
    %v511 = vextract.low.u32 %v510
    %v512 = vextract.high.u32 %v510
    %v513 = vmul.u32.u64.compose %v509, %v504
    %v514 = vextract.low.u32 %v513
    %v515 = vextract.high.u32 %v513
    %v516 = vmul.u32 %v509, %v500
    %v517 = vadd.s32 %v512, %v514
    %vm518 = vc.u32 %v512, %v514
    %v519 = vadd.s32 %v515, 1
    %v520 = vsel %vm518, %v519, %v515
    %v521 = vadd.s32 %v516, %v520
    %v522 = vadd.s32 %v521, 536870912
    %v523 = vshrl.u32 %v522, 30
    %v524 = vshll.u32 %v523, 30
    %v525 = vsub.s32 %v521, %v524
    %vm526 = vcmp.lt.s32.totalorder %v525, 0
    %v527 = vsub.s32 0, %v525
    %v528 = vsel %vm526, %v527, %v525
    %v529 = vclz %v528
    %v530 = vsub.s32 %v529, 2
    %vm531 = vcmp.gt.s32.totalorder 0, %v530
    %v532 = vsel %vm531, 0, %v530
    %v533 = vsub.s32 32, %v532
    %v534 = vshll.u32 %v525, %v532
    %v535 = vshrl.u32 %v517, %v533
    %v536 = vor.u32 %v534, %v535
    %v537 = vsub.s32 4294967266, %v532
    %v538 = vadd.s32 %v537, 127
    %v539 = vshll.u32 %v538, 23
    %v540 = vor.u32 4788187, %v539
    %v541 = vand.u32 2147483647, %v540
    %v543 = vcvt.s32.f32 %v536
    %v544 = vmul.f32 %v543, %v541
    %v545 = vxor.u32 %v544, 2147483648
    %v546 = vsel %vm463, %v545, %v544
    %v547 = vsub.s32 4, %v523
    %v548 = vsel %vm463, %v547, %v523
    %v549 = vsel %vm462, %v28, %v546
    %v550 = vsel %vm462, 0, %v548
    %v551 = vcosq.f32.pop %v549
    %v552 = vsinq.f32.pop %v549
    %vm553 = vweird.f32 %v28
    %v554 = vadd.s32 %v550, 3
    %v555 = vand.u32 %v554, 3
    %vm556 = vcmp.lt.s32.totalorder %v555, 2
    %vm557 = vcmp.eq.s32.totalorder %v555, 0
    %v558 = vxor.u32 %v552, 2147483648
    %v559 = vsel %vm557, %v551, %v558
    %vm560 = vcmp.eq.s32.totalorder %v555, 2
    %v561 = vxor.u32 %v551, 2147483648
    %v562 = vsel %vm560, %v561, %v552
    %v563 = vsel %vm556, %v559, %v562
    %v564 = vsel %vm553, nan, %v563
    %v565 = vand.u32 2147483647, %v28
    %vm566 = vcmp.le.f32.partialorder %v565, 0.7853982
    %vm567 = vcmp.lt.s32.totalorder %v28, 0
    %v568 = vand.u32 %v28, 2139095040
    %v569 = vshrl.u32 %v568, 23
    %v570 = vsub.s32 %v569, 127
    %v571 = vand.u32 2147483647, %v28
    %v572 = vand.u32 %v571, 8388607
    %v573 = vor.u32 %v572, 8388608
    %v574 = vsub.s32 0, %v573
    %v575 = vadd.s32 %v570, 1
    %vm576 = vcmp.gt.s32.totalorder %v575, 0
    %v577 = vsel %vm576, %v575, 0
    %v578 = vshrl.u32 %v577, 5
    %v579 = vand.u32 %v577, 31
    %v580 = vsub.s32 32, %v579
    %v581 = vshrl.u32 683565275, %v580
    %v582 = vshll.u32 683565275, %v579
    %v583 = vshrl.u32 2475754826, %v580
    %v584 = vor.u32 %v582, %v583
    %v585 = vshll.u32 2475754826, %v579
    %v586 = vshrl.u32 2131351028, %v580
    %v587 = vor.u32 %v585, %v586
    %v588 = vshll.u32 2131351028, %v579
    %v589 = vshrl.u32 2102212464, %v580
    %v590 = vor.u32 %v588, %v589
    %v591 = vshll.u32 2102212464, %v579
    %v592 = vshrl.u32 920167782, %v580
    %v593 = vor.u32 %v591, %v592
    %v594 = vshll.u32 920167782, %v579
    %v595 = vshrl.u32 1326507024, %v580
    %v596 = vor.u32 %v594, %v595
    %vm597 = vcmp.lt.s32.totalorder %v578, 1
    %vm598 = vcmp.lt.s32.totalorder %v578, 2
    %vm599 = vcmp.lt.s32.totalorder %v578, 3
    %vm600 = vcmp.lt.s32.totalorder %v578, 4
    %v601 = vsel %vm597, %v581, %v584
    %v602 = vsel %vm600, %v590, 2102212464
    %v603 = vsel %vm599, %v587, %v602
    %v604 = vsel %vm598, %v601, %v603
    %v605 = vsel %vm597, %v584, %v587
    %v606 = vsel %vm600, %v593, 920167782
    %v607 = vsel %vm599, %v590, %v606
    %v608 = vsel %vm598, %v605, %v607
    %v609 = vsel %vm597, %v587, %v590
    %v610 = vsel %vm600, %v596, 1326507024
    %v611 = vsel %vm599, %v593, %v610
    %v612 = vsel %vm598, %v609, %v611
    %v613 = vshll.u32 %v573, 8
    %v614 = vmul.u32.u64.compose %v613, %v612
    %v615 = vextract.low.u32 %v614
    %v616 = vextract.high.u32 %v614
    %v617 = vmul.u32.u64.compose %v613, %v608
    %v618 = vextract.low.u32 %v617
    %v619 = vextract.high.u32 %v617
    %v620 = vmul.u32 %v613, %v604
    %v621 = vadd.s32 %v616, %v618
    %vm622 = vc.u32 %v616, %v618
    %v623 = vadd.s32 %v619, 1
    %v624 = vsel %vm622, %v623, %v619
    %v625 = vadd.s32 %v620, %v624
    %v626 = vadd.s32 %v625, 536870912
    %v627 = vshrl.u32 %v626, 30
    %v628 = vshll.u32 %v627, 30
    %v629 = vsub.s32 %v625, %v628
    %vm630 = vcmp.lt.s32.totalorder %v629, 0
    %v631 = vsub.s32 0, %v629
    %v632 = vsel %vm630, %v631, %v629
    %v633 = vclz %v632
    %v634 = vsub.s32 %v633, 2
    %vm635 = vcmp.gt.s32.totalorder 0, %v634
    %v636 = vsel %vm635, 0, %v634
    %v637 = vsub.s32 32, %v636
    %v638 = vshll.u32 %v629, %v636
    %v639 = vshrl.u32 %v621, %v637
    %v640 = vor.u32 %v638, %v639
    %v641 = vsub.s32 4294967266, %v636
    %v642 = vadd.s32 %v641, 127
    %v643 = vshll.u32 %v642, 23
    %v644 = vor.u32 4788187, %v643
    %v645 = vand.u32 2147483647, %v644
    %v647 = vcvt.s32.f32 %v640
    %v648 = vmul.f32 %v647, %v645
    %v649 = vxor.u32 %v648, 2147483648
    %v650 = vsel %vm567, %v649, %v648
    %v651 = vsub.s32 4, %v627
    %v652 = vsel %vm567, %v651, %v627
    %v653 = vsel %vm566, %v28, %v650
    %v654 = vsel %vm566, 0, %v652
    %v655 = vcosq.f32.pop %v653
    %v656 = vsinq.f32.pop %v653
    %vm657 = vweird.f32 %v28
    %v658 = vand.u32 %v654, 3
    %vm659 = vcmp.lt.s32.totalorder %v658, 2
    %vm660 = vcmp.eq.s32.totalorder %v658, 0
    %v661 = vxor.u32 %v656, 2147483648
    %v662 = vsel %vm660, %v655, %v661
    %vm663 = vcmp.eq.s32.totalorder %v658, 2
    %v664 = vxor.u32 %v655, 2147483648
    %v665 = vsel %vm663, %v664, %v656
    %v666 = vsel %vm659, %v662, %v665
    %v667 = vsel %vm657, nan, %v666
    %v668 = vrcp.pop %v253
    %v669 = vmul.f32 1.0, %v668
    %v670 = vmul.f32 %v150, %v669
    %v671 = vmul.f32 %v357, %v150
    %v672 = vmul.f32 %v460, %v150
    %v673 = vmul.f32 %v40, %v460
    %v674 = vmul.f32 %v38, %v357
    %v675 = vadd.f32 %v673, %v674
    %v676 = vmul.f32 %v253, %v667
    %v677 = vmul.f32 %v30, %v676
    %v678 = vmul.f32 %v671, %v667
    %v679 = vmul.f32 %v460, %v564
    %v680 = vsub.f32 %v678, %v679
    %v681 = vmul.f32 %v32, %v680
    %v682 = vadd.f32 %v677, %v681
    %v683 = vmul.f32 %v357, %v564
    %v684 = vmul.f32 %v672, %v667
    %v685 = vadd.f32 %v683, %v684
    %v686 = vmul.f32 %v34, %v685
    %v687 = vadd.f32 %v682, %v686
    %688 = vst [vmem:[#allocation5] sm:$0xff] %v687
    %v689 = vmul.f32 %v253, %v564
    %v690 = vmul.f32 %v30, %v689
    %v691 = vmul.f32 %v671, %v564
    %v692 = vmul.f32 %v460, %v667
    %v693 = vadd.f32 %v691, %v692
    %v694 = vmul.f32 %v32, %v693
    %v695 = vadd.f32 %v690, %v694
    %v696 = vsub.f32 0.0, %v357
    %v697 = vmul.f32 %v696, %v667
    %v698 = vmul.f32 %v672, %v564
    %v699 = vadd.f32 %v697, %v698
    %v700 = vmul.f32 %v34, %v699
    %v701 = vadd.f32 %v695, %v700
    %s702 = scalar_lea.vmem [#allocation5], 8
    %703 = vst [vmem:[%s702] sm:$0xff] %v701
    %v704 = vmul.f32 %v30, %v150
    %v705 = vmul.f32 %v357, %v253
    %v706 = vmul.f32 %v32, %v705
    %v707 = vsub.f32 %v704, %v706
    %v708 = vmul.f32 %v460, %v253
    %v709 = vmul.f32 %v34, %v708
    %v710 = vsub.f32 %v707, %v709
    %s711 = scalar_lea.vmem [#allocation5], 16
    %712 = vst [vmem:[%s711] sm:$0xff] %v710
    %v713 = vmul.f32 %v675, %v670
    %v714 = vadd.f32 %v36, %v713
    %s715 = scalar_lea.vmem [#allocation5], 24
    %716 = vst [vmem:[%s715] sm:$0xff] %v714
    %v717 = vmul.f32 %v38, %v460
    %v718 = vmul.f32 %v40, %v357
    %v719 = vsub.f32 %v717, %v718
    %s720 = scalar_lea.vmem [#allocation5], 32
    %721 = vst [vmem:[%s720] sm:$0xff] %v719
    %v722 = vmul.f32 %v675, %v669
    %s723 = scalar_lea.vmem [#allocation5], 40
    %724 = vst [vmem:[%s723] sm:$0xff] %v722
    %v725 = vmul.f32 %v32, %v40
    %v726 = vmul.f32 %v34, %v38
    %v727 = vsub.f32 %v725, %v726
    %v728 = vmul.f32 %v150, 9.81
    %v729 = vsub.f32 %v727, %v728
    %v730 = vmul.f32 %v42, 0.0033333334
    %v731 = vadd.f32 %v729, %v730
    %s732 = scalar_lea.vmem [#allocation5], 48
    %733 = vst [vmem:[%s732] sm:$0xff] %v731
    %v734 = vsub.f32 0.0, %v30
    %v735 = vmul.f32 %v734, %v40
    %v736 = vmul.f32 %v34, %v36
    %v737 = vadd.f32 %v735, %v736
    %v738 = vmul.f32 %v253, 9.81
    %v739 = vmul.f32 %v738, %v357
    %v740 = vadd.f32 %v737, %v739
    %v741 = vmul.f32 %v44, 0.0033333334
    %v742 = vadd.f32 %v740, %v741
    %s743 = scalar_lea.vmem [#allocation5], 56
    %744 = vst [vmem:[%s743] sm:$0xff] %v742
    %v745 = vmul.f32 %v30, %v38
    %v746 = vmul.f32 %v32, %v36
    %v747 = vsub.f32 %v745, %v746
    %v748 = vmul.f32 %v738, %v460
    %v749 = vadd.f32 %v747, %v748
    %v750 = vmul.f32 %v46, 0.0033333334
    %v751 = vadd.f32 %v749, %v750
    %s752 = scalar_lea.vmem [#allocation5], 64
    %753 = vst [vmem:[%s752] sm:$0xff] %v751
    %v754 = vmul.f32 %v38, %v40
    %v755 = vmul.f32 %v754, 0.0
    %v756 = vsub.f32 1.0, %v755
    %v757 = vmul.f32 %v36, %v38
    %v758 = vmul.f32 %v757, 0.0
    %v759 = vadd.f32 %v756, %v758
    %v760 = vsub.f32 1.0, %v758
    %v761 = vsub.f32 %v760, %v755
    %v762 = vmul.f32 %v36, %v40
    %v763 = vmul.f32 %v762, 0.0
    %v764 = vsub.f32 1.0, %v763
    %v765 = vmul.f32 %v36, %v36
    %v766 = vmul.f32 %v40, %v40
    %v767 = vsub.f32 %v765, %v766
    %v768 = vmul.f32 %v767, 0.0
    %v769 = vsub.f32 %v764, %v768
    %v770 = vmul.f32 %v761, 0.0
    %v771 = vadd.f32 %v759, %v770
    %s772 = scalar_lea.vmem [#allocation5], 72
    %773 = vst [vmem:[%s772] sm:$0xff] %v771
    %s774 = scalar_lea.vmem [#allocation5], 80
    %775 = vst [vmem:[%s774] sm:$0xff] %v769
    %v776 = vmul.f32 %v759, 0.0
    %v777 = vadd.f32 %v776, %v761
    %s778 = scalar_lea.vmem [#allocation5], 88
    %779 = vst [vmem:[%s778] sm:$0xff] %v777
    %s780 = scalar_lea.vmem [#allocation5], 96
    %781 = vst [vmem:[%s780] sm:$0xff] 0.0
    %s782 = scalar_lea.vmem [#allocation5], 104
    %783 = vst [vmem:[%s782] sm:$0xff] 0.0
    %s784 = scalar_lea.vmem [#allocation5], 112
    %785 = vst [vmem:[%s784] sm:$0xff] 0.0
    // Predicated region
    $region10: #{tpu_custom_call.1} parent=1 // pred_check
      _
    $region11: #{tpu_custom_call.1} parent=1 // pred_check_branch
      %787 = sbr.rel (0) target = $region13
    $region12: #{tpu_custom_call.1} parent=1 // pred_region
      %s789 = ssub.s32 1920, 1920
      %790 = vsyncadd [#allocation4], %s789
      %s791 = sshll.u32 [#allocation5], 4
      %s792 = int_to_ptr.vmem [resolvable:$true] %s791
      %797 = dma.vmem_to_hbm [thread:$0]  %s792, 1920, %s1, [#allocation4], 128, 128, 8
    $region13: #{tpu_custom_call.1} parent=1 // pred_fallthru
      _
    // Predicated region
    $region14: #{tpu_custom_call.1} parent=1 // pred_check
      _
    $region15: #{tpu_custom_call.1} parent=1 // pred_check_branch
      %799 = sbr.rel (0) target = $region17
    $region16: #{tpu_custom_call.1} parent=1 // pred_region
      %800 = dma.done [#allocation4], 1920
    $region17: #{tpu_custom_call.1} parent=1 // pred_fallthru
      _
    %801 = vsyncpa [#allocation3], 1
    %802 = vsyncpa [#allocation4], 1

</llo_original>
